<compile_context>
chip_gen: v5e
topology: v5e:2x2
jax: 0.10.0
libtpu: 0.0.40
codegen_flags: <defaults>
</compile_context>

<pallas_src>
import jax
import jax.numpy as jnp
from jax.experimental import pallas as pl
from jax.experimental.pallas import tpu as pltpu


def _round_up(a, b):
    return ((a + b - 1) // b) * b


def linear_kernel(x_ref, wt_ref, b_ref, o_ref):
    # x_ref: [TB, IN], wt_ref: [IN, OUT] (pre-transposed), b_ref: [1, OUT]
    acc = jnp.dot(x_ref[...], wt_ref[...], preferred_element_type=jnp.float32)
    o_ref[...] = (acc + b_ref[...]).astype(o_ref.dtype)


def simple_model_forward(x, weight, bias):
    """x: [B, 1000] f32, weight: [5, 1000] f32, bias: [5] f32 -> [B, 5] f32"""
    B, IN = x.shape
    OUT = weight.shape[0]

    # One-time tiny host-side transforms (20 KB weight, 20 B bias).
    w_t = weight.T            # [IN, OUT] -> MXU-native NN matmul inside kernel
    b2d = bias.reshape(1, OUT)

    # Batch tile: multiple of 8 (sublane constraint), capped at 1024 rows
    # (fits every generation's default scoped VMEM double-buffered), and
    # capped at ~B/2 so the grid stays >= 2 for megacore sharding on v7x.
    TB = max(8, min(1024, _round_up(pl.cdiv(B, 2), 8)))
    grid = (pl.cdiv(B, TB),)   # ragged edge block is masked by Pallas

    return pl.pallas_call(
        linear_kernel,
        out_shape=jax.ShapeDtypeStruct((B, OUT), x.dtype),
        grid_spec=pltpu.PrefetchScalarGridSpec(
            num_scalar_prefetch=0,
            grid=grid,
            in_specs=[
                pl.BlockSpec((TB, IN), lambda i: (i, 0)),    # x: streamed over batch
                pl.BlockSpec((IN, OUT), lambda i: (0, 0)),   # W^T: resident in VMEM
                pl.BlockSpec((1, OUT), lambda i: (0, 0)),    # bias: resident in VMEM
            ],
            out_specs=pl.BlockSpec((TB, OUT), lambda i: (i, 0)),
        ),
        compiler_params=pltpu.CompilerParams(
            dimension_semantics=("parallel",)),  # shards grid across TCs on v7x
    )(x, w_t, b2d)


if __name__ == "__main__":
    key = jax.random.PRNGKey(0)
    k_x, k_w, k_b = jax.random.split(key, 3)

    B, IN, OUT = 8, 1000, 5
    x = jax.random.normal(k_x, (B, IN), dtype=jnp.float32)
    # Deterministic parameter init (mimics Linear's uniform(-1/sqrt(IN), 1/sqrt(IN)))
    bound = 1.0 / jnp.sqrt(jnp.float32(IN))
    weight = jax.random.uniform(k_w, (OUT, IN), dtype=jnp.float32,
                                minval=-bound, maxval=bound)
    bias = jax.random.uniform(k_b, (OUT,), dtype=jnp.float32,
                              minval=-bound, maxval=bound)

    out = simple_model_forward(x, weight, bias)
    out = jax.block_until_ready(out)

    # Correctness check against plain-JAX reference
    ref = x @ weight.T + bias
    assert out.shape == (B, OUT)
    assert jnp.allclose(out, ref, atol=1e-4, rtol=1e-4)

    print("KERNEL_OK")
</pallas_src>

<mosaic_0001>
module attributes {stable_mosaic.version = 11 : i64} {
  func.func @linear_kernel(%arg0: i32, %arg1: memref<8x1000xf32, #tpu.memory_space<vmem>>, %arg2: memref<1000x5xf32, #tpu.memory_space<vmem>>, %arg3: memref<1x5xf32, #tpu.memory_space<vmem>>, %arg4: memref<8x5xf32, #tpu.memory_space<vmem>>) attributes {dimension_semantics = [#tpu.dimension_semantics<parallel>], iteration_bounds = array<i64: 1>, scalar_prefetch = 0 : i64, scratch_operands = 0 : i64, tpu.core_type = #tpu.core_type<tc>, window_params = [{transform_indices = @transform_0, window_bounds = array<i64: 8, 1000>}, {pipeline_mode = #tpu.pipeline_mode<synchronous>, transform_indices = @transform_1, window_bounds = array<i64: 1000, 5>}, {pipeline_mode = #tpu.pipeline_mode<synchronous>, transform_indices = @transform_2, window_bounds = array<i64: 1, 5>}, {transform_indices = @transform_3, window_bounds = array<i64: 8, 5>}]} {
    %c0 = arith.constant 0 : index
    %c0_0 = arith.constant 0 : index
    %0 = vector.load %arg1[%c0, %c0_0] : memref<8x1000xf32, #tpu.memory_space<vmem>>, vector<8x1000xf32>
    %c0_1 = arith.constant 0 : index
    %c0_2 = arith.constant 0 : index
    %1 = vector.load %arg2[%c0_1, %c0_2] : memref<1000x5xf32, #tpu.memory_space<vmem>>, vector<1000x5xf32>
    %cst = arith.constant dense<0.000000e+00> : vector<8x5xf32>
    %2 = tpu.matmul %0, %1, %cst {dimension_numbers = #tpu.dot_dimension_numbers<[1], [0], [0], [1], [0, 0, 1, 1], [], []>} : vector<8x1000xf32>, vector<1000x5xf32>, vector<8x5xf32> -> vector<8x5xf32>
    %c0_3 = arith.constant 0 : index
    %c0_4 = arith.constant 0 : index
    %3 = vector.load %arg3[%c0_3, %c0_4] : memref<1x5xf32, #tpu.memory_space<vmem>>, vector<1x5xf32>
    %4 = vector.broadcast %3 : vector<1x5xf32> to vector<8x5xf32>
    %5 = arith.addf %2, %4 : vector<8x5xf32>
    %c0_5 = arith.constant 0 : index
    %c0_6 = arith.constant 0 : index
    %6 = vector.load %arg4[%c0_5, %c0_6] : memref<8x5xf32, #tpu.memory_space<vmem>>, vector<8x5xf32>
    tpu.vector_store %arg4[%c0_5, %c0_6], %5 {strides = array<i32>} : memref<8x5xf32, #tpu.memory_space<vmem>>, vector<8x5xf32>,
    return
  }
  func.func @transform_0(%arg0: i32) -> (i32, i32) {
    %c0_i32 = arith.constant 0 : i32
    %c0_i32_0 = arith.constant 0 : i32
    return %arg0, %c0_i32 : i32, i32
  }
  func.func @transform_1(%arg0: i32) -> (i32, i32) {
    %c0_i32 = arith.constant 0 : i32
    %c0_i32_0 = arith.constant 0 : i32
    %c0_i32_1 = arith.constant 0 : i32
    return %c0_i32, %c0_i32_0 : i32, i32
  }
  func.func @transform_2(%arg0: i32) -> (i32, i32) {
    %c0_i32 = arith.constant 0 : i32
    %c0_i32_0 = arith.constant 0 : i32
    %c0_i32_1 = arith.constant 0 : i32
    return %c0_i32, %c0_i32_0 : i32, i32
  }
  func.func @transform_3(%arg0: i32) -> (i32, i32) {
    %c0_i32 = arith.constant 0 : i32
    %c0_i32_0 = arith.constant 0 : i32
    return %arg0, %c0_i32 : i32, i32
  }
}

</mosaic_0001>

<llo_original>
// kernel: tpu_custom_call.1
$region0: #{tpu_custom_call.1}
  #allocation0 [shape = 'u32[]', space=smem, size = 0x4, offset = 0x4, fixed_abs, tag = 'smem constant byte address 0x4 - core index']
  #allocation1 [shape = 'u32[72,128]{1,0:T(1,128)}', space=vmem, size = 0x9000, scoped, tag = 'internal scratch']
  %s0 = inlined_call_operand.vmem [shape: f32[8,1000], index: 0, kind: input, shape index: {}]
  %s1 = inlined_call_operand.vmem [shape: f32[1000,5], index: 1, kind: input, shape index: {}]
  %s2 = inlined_call_operand.vmem [shape: f32[1,5], index: 2, kind: input, shape index: {}]
  %s3 = inlined_call_operand.hbm [shape: f32[8,5], index: 3, kind: output, shape index: {}]
  %s4 = sld [smem:[#allocation0]]
  $region22: #{tpu_custom_call.1} parent=0
    _
  %s6 = ssub.s32 1, %s4
  %s7 = scalar_select 0, %s6, %s4
  $region1: #{tpu_custom_call.1} parent=0
    #allocation2 [shape = 'u8[4096]{0}', space=vmem, size = 0x1000, scoped, tag = 'output window, operand 0, single buffered']
    #allocation3 [shape = 's32[1]{0}', space=sflag, size = 0x4, scoped, tag = 'scoped memory for tpu_custom_call.1']
    %8 = vsyncpa [#allocation3], 0
    // Predicated region
    $region2: #{tpu_custom_call.1} parent=1 // pred_check
      _
    $region3: #{tpu_custom_call.1} parent=1 // pred_check_branch
      %10 = sbr.rel (0) target = $region5
    $region4: #{tpu_custom_call.1} parent=1 // pred_region
      _
    $region5: #{tpu_custom_call.1} parent=1 // pred_fallthru
      _
    // Predicated region
    $region6: #{tpu_custom_call.1} parent=1 // pred_check
      _
    $region7: #{tpu_custom_call.1} parent=1 // pred_check_branch
      %12 = sbr.rel (0) target = $region9
    $region8: #{tpu_custom_call.1} parent=1 // pred_region
      _
    $region9: #{tpu_custom_call.1} parent=1 // pred_fallthru
      _
    // Predicated region
    $region10: #{tpu_custom_call.1} parent=1 // pred_check
      _
    $region11: #{tpu_custom_call.1} parent=1 // pred_check_branch
      %14 = sbr.rel (0) target = $region13
    $region12: #{tpu_custom_call.1} parent=1 // pred_region
      _
    $region13: #{tpu_custom_call.1} parent=1 // pred_fallthru
      _
    %v15 = vld [vmem:[%s0] sm:$0xff]
    %v16 = vld [vmem:[%s0 + $0x8] sm:$0xff]
    %v17 = vld [vmem:[%s0 + $0x10] sm:$0xff]
    %v18 = vld [vmem:[%s0 + $0x18] sm:$0xff]
    %v19 = vld [vmem:[%s0 + $0x20] sm:$0xff]
    %v20 = vld [vmem:[%s0 + $0x28] sm:$0xff]
    %v21 = vld [vmem:[%s0 + $0x30] sm:$0xff]
    %v22 = vld [vmem:[%s0 + $0x38] sm:$0xff]
    %v23 = vld [vmem:[%s1] sm:$0xff]
    %v24 = vld [vmem:[%s1 + $0x8] sm:$0xff]
    %v25 = vld [vmem:[%s1 + $0x10] sm:$0xff]
    %v26 = vld [vmem:[%s1 + $0x18] sm:$0xff]
    %v27 = vld [vmem:[%s1 + $0x20] sm:$0xff]
    %v28 = vld [vmem:[%s1 + $0x28] sm:$0xff]
    %v29 = vld [vmem:[%s1 + $0x30] sm:$0xff]
    %v30 = vld [vmem:[%s1 + $0x38] sm:$0xff]
    %v31 = vld [vmem:[%s1 + $0x40] sm:$0xff]
    %v32 = vld [vmem:[%s1 + $0x48] sm:$0xff]
    %v33 = vld [vmem:[%s1 + $0x50] sm:$0xff]
    %v34 = vld [vmem:[%s1 + $0x58] sm:$0xff]
    %v35 = vld [vmem:[%s1 + $0x60] sm:$0xff]
    %v36 = vld [vmem:[%s1 + $0x68] sm:$0xff]
    %v37 = vld [vmem:[%s1 + $0x70] sm:$0xff]
    %v38 = vld [vmem:[%s1 + $0x78] sm:$0xff]
    %v39 = vld [vmem:[%s1 + $0x80] sm:$0xff]
    %v40 = vld [vmem:[%s1 + $0x88] sm:$0xff]
    %v41 = vld [vmem:[%s1 + $0x90] sm:$0xff]
    %v42 = vld [vmem:[%s1 + $0x98] sm:$0xff]
    %v43 = vld [vmem:[%s1 + $0xa0] sm:$0xff]
    %v44 = vld [vmem:[%s1 + $0xa8] sm:$0xff]
    %v45 = vld [vmem:[%s1 + $0xb0] sm:$0xff]
    %v46 = vld [vmem:[%s1 + $0xb8] sm:$0xff]
    %v47 = vld [vmem:[%s1 + $0xc0] sm:$0xff]
    %v48 = vld [vmem:[%s1 + $0xc8] sm:$0xff]
    %v49 = vld [vmem:[%s1 + $0xd0] sm:$0xff]
    %v50 = vld [vmem:[%s1 + $0xd8] sm:$0xff]
    %v51 = vld [vmem:[%s1 + $0xe0] sm:$0xff]
    %v52 = vld [vmem:[%s1 + $0xe8] sm:$0xff]
    %v53 = vld [vmem:[%s1 + $0xf0] sm:$0xff]
    %v54 = vld [vmem:[%s1 + $0xf8] sm:$0xff]
    %v55 = vld [vmem:[%s1 + $0x100] sm:$0xff]
    %v56 = vld [vmem:[%s1 + $0x108] sm:$0xff]
    %v57 = vld [vmem:[%s1 + $0x110] sm:$0xff]
    %v58 = vld [vmem:[%s1 + $0x118] sm:$0xff]
    %v59 = vld [vmem:[%s1 + $0x120] sm:$0xff]
    %v60 = vld [vmem:[%s1 + $0x128] sm:$0xff]
    %v61 = vld [vmem:[%s1 + $0x130] sm:$0xff]
    %v62 = vld [vmem:[%s1 + $0x138] sm:$0xff]
    %v63 = vld [vmem:[%s1 + $0x140] sm:$0xff]
    %v64 = vld [vmem:[%s1 + $0x148] sm:$0xff]
    %v65 = vld [vmem:[%s1 + $0x150] sm:$0xff]
    %v66 = vld [vmem:[%s1 + $0x158] sm:$0xff]
    %v67 = vld [vmem:[%s1 + $0x160] sm:$0xff]
    %v68 = vld [vmem:[%s1 + $0x168] sm:$0xff]
    %v69 = vld [vmem:[%s1 + $0x170] sm:$0xff]
    %v70 = vld [vmem:[%s1 + $0x178] sm:$0xff]
    %v71 = vld [vmem:[%s1 + $0x180] sm:$0xff]
    %v72 = vld [vmem:[%s1 + $0x188] sm:$0xff]
    %v73 = vld [vmem:[%s1 + $0x190] sm:$0xff]
    %v74 = vld [vmem:[%s1 + $0x198] sm:$0xff]
    %v75 = vld [vmem:[%s1 + $0x1a0] sm:$0xff]
    %v76 = vld [vmem:[%s1 + $0x1a8] sm:$0xff]
    %v77 = vld [vmem:[%s1 + $0x1b0] sm:$0xff]
    %v78 = vld [vmem:[%s1 + $0x1b8] sm:$0xff]
    %v79 = vld [vmem:[%s1 + $0x1c0] sm:$0xff]
    %v80 = vld [vmem:[%s1 + $0x1c8] sm:$0xff]
    %v81 = vld [vmem:[%s1 + $0x1d0] sm:$0xff]
    %v82 = vld [vmem:[%s1 + $0x1d8] sm:$0xff]
    %v83 = vld [vmem:[%s1 + $0x1e0] sm:$0xff]
    %v84 = vld [vmem:[%s1 + $0x1e8] sm:$0xff]
    %v85 = vld [vmem:[%s1 + $0x1f0] sm:$0xff]
    %v86 = vld [vmem:[%s1 + $0x1f8] sm:$0xff]
    %v87 = vld [vmem:[%s1 + $0x200] sm:$0xff]
    %v88 = vld [vmem:[%s1 + $0x208] sm:$0xff]
    %v89 = vld [vmem:[%s1 + $0x210] sm:$0xff]
    %v90 = vld [vmem:[%s1 + $0x218] sm:$0xff]
    %v91 = vld [vmem:[%s1 + $0x220] sm:$0xff]
    %v92 = vld [vmem:[%s1 + $0x228] sm:$0xff]
    %v93 = vld [vmem:[%s1 + $0x230] sm:$0xff]
    %v94 = vld [vmem:[%s1 + $0x238] sm:$0xff]
    %v95 = vld [vmem:[%s1 + $0x240] sm:$0xff]
    %v96 = vld [vmem:[%s1 + $0x248] sm:$0xff]
    %v97 = vld [vmem:[%s1 + $0x250] sm:$0xff]
    %v98 = vld [vmem:[%s1 + $0x258] sm:$0xff]
    %v99 = vld [vmem:[%s1 + $0x260] sm:$0xff]
    %v100 = vld [vmem:[%s1 + $0x268] sm:$0xff]
    %v101 = vld [vmem:[%s1 + $0x270] sm:$0xff]
    %v102 = vld [vmem:[%s1 + $0x278] sm:$0xff]
    %v103 = vld [vmem:[%s1 + $0x280] sm:$0xff]
    %v104 = vld [vmem:[%s1 + $0x288] sm:$0xff]
    %v105 = vld [vmem:[%s1 + $0x290] sm:$0xff]
    %v106 = vld [vmem:[%s1 + $0x298] sm:$0xff]
    %v107 = vld [vmem:[%s1 + $0x2a0] sm:$0xff]
    %v108 = vld [vmem:[%s1 + $0x2a8] sm:$0xff]
    %v109 = vld [vmem:[%s1 + $0x2b0] sm:$0xff]
    %v110 = vld [vmem:[%s1 + $0x2b8] sm:$0xff]
    %v111 = vld [vmem:[%s1 + $0x2c0] sm:$0xff]
    %v112 = vld [vmem:[%s1 + $0x2c8] sm:$0xff]
    %v113 = vld [vmem:[%s1 + $0x2d0] sm:$0xff]
    %v114 = vld [vmem:[%s1 + $0x2d8] sm:$0xff]
    %v115 = vld [vmem:[%s1 + $0x2e0] sm:$0xff]
    %v116 = vld [vmem:[%s1 + $0x2e8] sm:$0xff]
    %v117 = vld [vmem:[%s1 + $0x2f0] sm:$0xff]
    %v118 = vld [vmem:[%s1 + $0x2f8] sm:$0xff]
    %v119 = vld [vmem:[%s1 + $0x300] sm:$0xff]
    %v120 = vld [vmem:[%s1 + $0x308] sm:$0xff]
    %v121 = vld [vmem:[%s1 + $0x310] sm:$0xff]
    %v122 = vld [vmem:[%s1 + $0x318] sm:$0xff]
    %v123 = vld [vmem:[%s1 + $0x320] sm:$0xff]
    %v124 = vld [vmem:[%s1 + $0x328] sm:$0xff]
    %v125 = vld [vmem:[%s1 + $0x330] sm:$0xff]
    %v126 = vld [vmem:[%s1 + $0x338] sm:$0xff]
    %v127 = vld [vmem:[%s1 + $0x340] sm:$0xff]
    %v128 = vld [vmem:[%s1 + $0x348] sm:$0xff]
    %v129 = vld [vmem:[%s1 + $0x350] sm:$0xff]
    %v130 = vld [vmem:[%s1 + $0x358] sm:$0xff]
    %v131 = vld [vmem:[%s1 + $0x360] sm:$0xff]
    %v132 = vld [vmem:[%s1 + $0x368] sm:$0xff]
    %v133 = vld [vmem:[%s1 + $0x370] sm:$0xff]
    %v134 = vld [vmem:[%s1 + $0x378] sm:$0xff]
    %v135 = vld [vmem:[%s1 + $0x380] sm:$0xff]
    %v136 = vld [vmem:[%s1 + $0x388] sm:$0xff]
    %v137 = vld [vmem:[%s1 + $0x390] sm:$0xff]
    %v138 = vld [vmem:[%s1 + $0x398] sm:$0xff]
    %v139 = vld [vmem:[%s1 + $0x3a0] sm:$0xff]
    %v140 = vld [vmem:[%s1 + $0x3a8] sm:$0xff]
    %v141 = vld [vmem:[%s1 + $0x3b0] sm:$0xff]
    %v142 = vld [vmem:[%s1 + $0x3b8] sm:$0xff]
    %v143 = vld [vmem:[%s1 + $0x3c0] sm:$0xff]
    %v144 = vld [vmem:[%s1 + $0x3c8] sm:$0xff]
    %v145 = vld [vmem:[%s1 + $0x3d0] sm:$0xff]
    %v146 = vld [vmem:[%s1 + $0x3d8] sm:$0xff]
    %v147 = vld [vmem:[%s1 + $0x3e0] sm:$0xff]
    %v148 = vld [vmem:[%s2] sm:$0x1]
    %v150 = vperm.slane %v148, 0
    %vm152 = vcmask 850944
    %v154 = vsel %vm152, %v22, 0
    %156 = vmatpush.msra.mxu0 %v38
    %157 = vmatpush.msra.mxu0 %v37
    %158 = vmatpush.msra.mxu0 %v36
    %159 = vmatpush.msra.mxu0 %v35
    %160 = vmatpush.msra.mxu0 %v34
    %161 = vmatpush.msra.mxu0 %v33
    %162 = vmatpush.msra.mxu0 %v32
    %163 = vmatpush.msra.mxu0 %v31
    %164 = vmatpush.msra.mxu0 %v30
    %165 = vmatpush.msra.mxu0 %v29
    %166 = vmatpush.msra.mxu0 %v28
    %167 = vmatpush.msra.mxu0 %v27
    %168 = vmatpush.msra.mxu0 %v26
    %169 = vmatpush.msra.mxu0 %v25
    %170 = vmatpush.msra.mxu0 %v24
    %171 = vmatpush.msra.mxu0 %v23
    %172 = vmatmul.f32.gmra.mxu0 %v15
    %v173 = vpop.f32.mrf.mxu0
    %v174 = vadd.f32 %v150, %v173
    %175 = vdwg.mxu0
    %176 = vmatpush.msra.mxu0 %v54
    %177 = vmatpush.msra.mxu0 %v53
    %178 = vmatpush.msra.mxu0 %v52
    %179 = vmatpush.msra.mxu0 %v51
    %180 = vmatpush.msra.mxu0 %v50
    %181 = vmatpush.msra.mxu0 %v49
    %182 = vmatpush.msra.mxu0 %v48
    %183 = vmatpush.msra.mxu0 %v47
    %184 = vmatpush.msra.mxu0 %v46
    %185 = vmatpush.msra.mxu0 %v45
    %186 = vmatpush.msra.mxu0 %v44
    %187 = vmatpush.msra.mxu0 %v43
    %188 = vmatpush.msra.mxu0 %v42
    %189 = vmatpush.msra.mxu0 %v41
    %190 = vmatpush.msra.mxu0 %v40
    %191 = vmatpush.msra.mxu0 %v39
    %192 = vmatmul.f32.gmra.mxu0 %v16
    %v193 = vpop.f32.mrf.mxu0
    %v194 = vadd.f32 %v174, %v193
    %195 = vdwg.mxu0
    %196 = vmatpush.msra.mxu0 %v70
    %197 = vmatpush.msra.mxu0 %v69
    %198 = vmatpush.msra.mxu0 %v68
    %199 = vmatpush.msra.mxu0 %v67
    %200 = vmatpush.msra.mxu0 %v66
    %201 = vmatpush.msra.mxu0 %v65
    %202 = vmatpush.msra.mxu0 %v64
    %203 = vmatpush.msra.mxu0 %v63
    %204 = vmatpush.msra.mxu0 %v62
    %205 = vmatpush.msra.mxu0 %v61
    %206 = vmatpush.msra.mxu0 %v60
    %207 = vmatpush.msra.mxu0 %v59
    %208 = vmatpush.msra.mxu0 %v58
    %209 = vmatpush.msra.mxu0 %v57
    %210 = vmatpush.msra.mxu0 %v56
    %211 = vmatpush.msra.mxu0 %v55
    %212 = vmatmul.f32.gmra.mxu0 %v17
    %v213 = vpop.f32.mrf.mxu0
    %v214 = vadd.f32 %v194, %v213
    %215 = vdwg.mxu0
    %216 = vmatpush.msra.mxu0 %v86
    %217 = vmatpush.msra.mxu0 %v85
    %218 = vmatpush.msra.mxu0 %v84
    %219 = vmatpush.msra.mxu0 %v83
    %220 = vmatpush.msra.mxu0 %v82
    %221 = vmatpush.msra.mxu0 %v81
    %222 = vmatpush.msra.mxu0 %v80
    %223 = vmatpush.msra.mxu0 %v79
    %224 = vmatpush.msra.mxu0 %v78
    %225 = vmatpush.msra.mxu0 %v77
    %226 = vmatpush.msra.mxu0 %v76
    %227 = vmatpush.msra.mxu0 %v75
    %228 = vmatpush.msra.mxu0 %v74
    %229 = vmatpush.msra.mxu0 %v73
    %230 = vmatpush.msra.mxu0 %v72
    %231 = vmatpush.msra.mxu0 %v71
    %232 = vmatmul.f32.gmra.mxu0 %v18
    %v233 = vpop.f32.mrf.mxu0
    %v234 = vadd.f32 %v214, %v233
    %235 = vdwg.mxu0
    %236 = vmatpush.msra.mxu0 %v102
    %237 = vmatpush.msra.mxu0 %v101
    %238 = vmatpush.msra.mxu0 %v100
    %239 = vmatpush.msra.mxu0 %v99
    %240 = vmatpush.msra.mxu0 %v98
    %241 = vmatpush.msra.mxu0 %v97
    %242 = vmatpush.msra.mxu0 %v96
    %243 = vmatpush.msra.mxu0 %v95
    %244 = vmatpush.msra.mxu0 %v94
    %245 = vmatpush.msra.mxu0 %v93
    %246 = vmatpush.msra.mxu0 %v92
    %247 = vmatpush.msra.mxu0 %v91
    %248 = vmatpush.msra.mxu0 %v90
    %249 = vmatpush.msra.mxu0 %v89
    %250 = vmatpush.msra.mxu0 %v88
    %251 = vmatpush.msra.mxu0 %v87
    %252 = vmatmul.f32.gmra.mxu0 %v19
    %v253 = vpop.f32.mrf.mxu0
    %v254 = vadd.f32 %v234, %v253
    %255 = vdwg.mxu0
    %256 = vmatpush.msra.mxu0 %v118
    %257 = vmatpush.msra.mxu0 %v117
    %258 = vmatpush.msra.mxu0 %v116
    %259 = vmatpush.msra.mxu0 %v115
    %260 = vmatpush.msra.mxu0 %v114
    %261 = vmatpush.msra.mxu0 %v113
    %262 = vmatpush.msra.mxu0 %v112
    %263 = vmatpush.msra.mxu0 %v111
    %264 = vmatpush.msra.mxu0 %v110
    %265 = vmatpush.msra.mxu0 %v109
    %266 = vmatpush.msra.mxu0 %v108
    %267 = vmatpush.msra.mxu0 %v107
    %268 = vmatpush.msra.mxu0 %v106
    %269 = vmatpush.msra.mxu0 %v105
    %270 = vmatpush.msra.mxu0 %v104
    %271 = vmatpush.msra.mxu0 %v103
    %272 = vmatmul.f32.gmra.mxu0 %v20
    %v273 = vpop.f32.mrf.mxu0
    %v274 = vadd.f32 %v254, %v273
    %275 = vdwg.mxu0
    %276 = vmatpush.msra.mxu0 %v134
    %277 = vmatpush.msra.mxu0 %v133
    %278 = vmatpush.msra.mxu0 %v132
    %279 = vmatpush.msra.mxu0 %v131
    %280 = vmatpush.msra.mxu0 %v130
    %281 = vmatpush.msra.mxu0 %v129
    %282 = vmatpush.msra.mxu0 %v128
    %283 = vmatpush.msra.mxu0 %v127
    %284 = vmatpush.msra.mxu0 %v126
    %285 = vmatpush.msra.mxu0 %v125
    %286 = vmatpush.msra.mxu0 %v124
    %287 = vmatpush.msra.mxu0 %v123
    %288 = vmatpush.msra.mxu0 %v122
    %289 = vmatpush.msra.mxu0 %v121
    %290 = vmatpush.msra.mxu0 %v120
    %291 = vmatpush.msra.mxu0 %v119
    %292 = vmatmul.f32.gmra.mxu0 %v21
    %v293 = vpop.f32.mrf.mxu0
    %v294 = vadd.f32 %v274, %v293
    %295 = vdwg.mxu0
    %296 = vmatpush.msra.mxu0 0.0
    %297 = vmatpush.msra.mxu0 0.0
    %298 = vmatpush.msra.mxu0 0.0
    %299 = vmatpush.msra.mxu0 %v147
    %300 = vmatpush.msra.mxu0 %v146
    %301 = vmatpush.msra.mxu0 %v145
    %302 = vmatpush.msra.mxu0 %v144
    %303 = vmatpush.msra.mxu0 %v143
    %304 = vmatpush.msra.mxu0 %v142
    %305 = vmatpush.msra.mxu0 %v141
    %306 = vmatpush.msra.mxu0 %v140
    %307 = vmatpush.msra.mxu0 %v139
    %308 = vmatpush.msra.mxu0 %v138
    %309 = vmatpush.msra.mxu0 %v137
    %310 = vmatpush.msra.mxu0 %v136
    %311 = vmatpush.msra.mxu0 %v135
    %312 = vmatmul.f32.gmra.mxu0 %v154
    %v313 = vpop.f32.mrf.mxu0
    %v314 = vadd.f32 %v294, %v313
    %315 = vdwg.mxu0
    %vm316 = vcmask 39936
    %317 = vst.msk [vmem:[#allocation2] sm:$0xff] %vm316, %v314
    // Predicated region
    $region14: #{tpu_custom_call.1} parent=1 // pred_check
      _
    $region15: #{tpu_custom_call.1} parent=1 // pred_check_branch
      %319 = sbr.rel (0) target = $region17
    $region16: #{tpu_custom_call.1} parent=1 // pred_region
      %321 = vsyncadd [#allocation3], 0
      %s323 = sshll.u32 [#allocation2], 4
      %s324 = int_to_ptr.vmem [resolvable:$true] %s323
      %s325 = sshll.u32 %s3, 4
      %s326 = int_to_ptr.hbm [resolvable:$true] %s325
      %328 = dma.vmem_to_hbm [thread:$0]  %s324, 128, %s326, [#allocation3]
    $region17: #{tpu_custom_call.1} parent=1 // pred_fallthru
      _
    // Predicated region
    $region18: #{tpu_custom_call.1} parent=1 // pred_check
      _
    $region19: #{tpu_custom_call.1} parent=1 // pred_check_branch
      %330 = sbr.rel (0) target = $region21
    $region20: #{tpu_custom_call.1} parent=1 // pred_region
      %332 = dma.done [#allocation3], 128
    $region21: #{tpu_custom_call.1} parent=1 // pred_fallthru
      _
    %333 = vsyncpa [#allocation3], 1

</llo_original>
